<compile_context>
chip_gen: v5e
topology: v5e:2x2
jax: 0.10.0
libtpu: 0.0.40
codegen_flags: <defaults>
</compile_context>

<pallas_src>
import functools

import jax
import jax.numpy as jnp
from jax.experimental import pallas as pl
from jax.experimental.pallas import tpu as pltpu


def _sphere_sdf_kernel(center_ref, radius_ref, pts_ref, out_ref):
    # center_ref: (3,) f32 SMEM; radius_ref: (1,) f32 SMEM
    # pts_ref:    (3, 8, T) f32 VMEM  (planar x/y/z, points on sublanes x lanes)
    # out_ref:    (8, T)    f32 VMEM
    dx = pts_ref[0] - center_ref[0]            # (8, T) full vregs
    dy = pts_ref[1] - center_ref[1]
    dz = pts_ref[2] - center_ref[2]
    out_ref[...] = jnp.sqrt(dx * dx + dy * dy + dz * dz) - radius_ref[0]


@functools.partial(jax.jit, static_argnames=("tile_n",))
def _sphere_sdf_impl(points, center, radius, tile_n):
    pts = points.reshape(-1, 3).astype(jnp.float32)      # view(-1, 3)
    n = pts.shape[0]

    # Points-per-step tile: force a multiple of 1024 (= 8 sublanes * 128 lanes
    # after the sublane repack), clamped to the (rounded-up) problem size.
    tile = max(1024, (int(tile_n) // 1024) * 1024)
    tile = min(tile, pl.cdiv(n, 1024) * 1024)

    # Pad the point count to a multiple of 8 for the sublane repack.  This
    # tiny pad fuses with the AoS->SoA transpose into one copy pass under jit.
    padded_n = pl.cdiv(n, 8) * 8
    if padded_n != n:
        pts = jnp.pad(pts, ((0, padded_n - n), (0, 0)))

    m = padded_n // 8                  # lane axis of the packed view
    t = tile // 8                      # lanes per grid step (multiple of 128)
    pts_packed = pts.T.reshape(3, 8, m)                 # SoA, (8, lane)-dense

    center_s = jnp.asarray(center, jnp.float32).reshape(3)   # (3,)  -> SMEM
    radius_s = jnp.asarray(radius, jnp.float32).reshape(1)   # (1,)  -> SMEM

    grid = (pl.cdiv(m, t),)            # ragged edge block is masked by Pallas
    out = pl.pallas_call(
        _sphere_sdf_kernel,
        out_shape=jax.ShapeDtypeStruct((8, m), jnp.float32),
        grid_spec=pltpu.PrefetchScalarGridSpec(
            num_scalar_prefetch=0,
            grid=grid,
            in_specs=[
                pl.BlockSpec(memory_space=pltpu.MemorySpace.SMEM),   # center (3,)
                pl.BlockSpec(memory_space=pltpu.MemorySpace.SMEM),   # radius (1,)
                pl.BlockSpec((3, 8, t), lambda i: (0, 0, i)),        # points tile
            ],
            out_specs=pl.BlockSpec((8, t), lambda i: (0, i)),        # dense out tile
        ),
        compiler_params=pltpu.CompilerParams(
            dimension_semantics=("parallel",),   # v7x: 2 TCs split the point axis
        ),
        cost_estimate=pl.CostEstimate(
            flops=9 * n, transcendentals=n, bytes_accessed=16 * n),
    )(center_s, radius_s, pts_packed)

    # Flatten restores the original point order (free reshape); the [:n] slice
    # only materializes a (small) copy when n % 8 != 0.
    return out.reshape(-1)[:n].reshape(n, 1)


def sphere_sdf(points, center, radius, *, tile_n=262144):
    """points: any shape (..., 3); center: (1,3) or (3,); radius: scalar.

    Returns the signed distance to the sphere, shape (N, 1), like SphereSDF.
    """
    return _sphere_sdf_impl(points, center, radius, tile_n=tile_n)


if __name__ == "__main__":
    key = jax.random.PRNGKey(0)

    # Deterministic "cfg" parameters (synthetic, not a checkpoint load).
    center = jnp.array([[0.1, -0.2, 0.3]], dtype=jnp.float32)   # (1, 3), like unsqueeze(0)
    radius = jnp.float32(1.0)

    # Small input consistent with forward(): any (..., 3) tensor of points.
    points = jax.random.normal(key, (2, 64, 3), dtype=jnp.float32)   # flattens to (128, 3)
    out = jax.block_until_ready(sphere_sdf(points, center, radius))
    ref = jnp.linalg.norm(points.reshape(-1, 3) - center, axis=-1, keepdims=True) - radius
    assert out.shape == (128, 1)
    assert jnp.allclose(out, ref, atol=1e-5, rtol=1e-5)

    # Ragged N (not a multiple of 8 / 128 / 1024) exercises pad + masked edge.
    points2 = jax.random.normal(jax.random.PRNGKey(1), (5, 13, 3), dtype=jnp.float32)  # 65 pts
    out2 = jax.block_until_ready(sphere_sdf(points2, center, radius))
    ref2 = jnp.linalg.norm(points2.reshape(-1, 3) - center, axis=-1, keepdims=True) - radius
    assert out2.shape == (65, 1)
    assert jnp.allclose(out2, ref2, atol=1e-5, rtol=1e-5)

    print("KERNEL_OK")
</pallas_src>

<mosaic_0001>
module attributes {stable_mosaic.version = 11 : i64} {
  func.func @_sphere_sdf_kernel(%arg0: i32, %arg1: memref<3xf32, #tpu.memory_space<smem>>, %arg2: memref<1xf32, #tpu.memory_space<smem>>, %arg3: memref<3x8x128xf32, #tpu.memory_space<vmem>>, %arg4: memref<8x128xf32, #tpu.memory_space<vmem>>) attributes {dimension_semantics = [#tpu.dimension_semantics<parallel>], iteration_bounds = array<i64: 1>, scalar_prefetch = 0 : i64, scratch_operands = 0 : i64, tpu.core_type = #tpu.core_type<tc>, window_params = [{transform_indices = @transform_0, window_bounds = array<i64: 3>}, {transform_indices = @transform_1, window_bounds = array<i64: 1>}, {transform_indices = @transform_2, window_bounds = array<i64: 3, 8, 128>}, {transform_indices = @transform_3, window_bounds = array<i64: 8, 128>}]} {
    %c0 = arith.constant 0 : index
    %c0_0 = arith.constant 0 : index
    %c0_1 = arith.constant 0 : index
    %0 = vector.load %arg3[%c0, %c0_0, %c0_1] : memref<3x8x128xf32, #tpu.memory_space<vmem>>, vector<1x8x128xf32>
    %1 = vector.shape_cast %0 : vector<1x8x128xf32> to vector<8x128xf32>
    %c0_2 = arith.constant 0 : index
    %2 = memref.load %arg1[%c0_2] : memref<3xf32, #tpu.memory_space<smem>>
    %3 = vector.broadcast %2 : f32 to vector<8x128xf32>
    %4 = arith.subf %1, %3 : vector<8x128xf32>
    %c1 = arith.constant 1 : index
    %c0_3 = arith.constant 0 : index
    %c0_4 = arith.constant 0 : index
    %5 = vector.load %arg3[%c1, %c0_3, %c0_4] : memref<3x8x128xf32, #tpu.memory_space<vmem>>, vector<1x8x128xf32>
    %6 = vector.shape_cast %5 : vector<1x8x128xf32> to vector<8x128xf32>
    %c1_5 = arith.constant 1 : index
    %7 = memref.load %arg1[%c1_5] : memref<3xf32, #tpu.memory_space<smem>>
    %8 = vector.broadcast %7 : f32 to vector<8x128xf32>
    %9 = arith.subf %6, %8 : vector<8x128xf32>
    %c2 = arith.constant 2 : index
    %c0_6 = arith.constant 0 : index
    %c0_7 = arith.constant 0 : index
    %10 = vector.load %arg3[%c2, %c0_6, %c0_7] : memref<3x8x128xf32, #tpu.memory_space<vmem>>, vector<1x8x128xf32>
    %11 = vector.shape_cast %10 : vector<1x8x128xf32> to vector<8x128xf32>
    %c2_8 = arith.constant 2 : index
    %12 = memref.load %arg1[%c2_8] : memref<3xf32, #tpu.memory_space<smem>>
    %13 = vector.broadcast %12 : f32 to vector<8x128xf32>
    %14 = arith.subf %11, %13 : vector<8x128xf32>
    %15 = arith.mulf %4, %4 : vector<8x128xf32>
    %16 = arith.mulf %9, %9 : vector<8x128xf32>
    %17 = arith.addf %15, %16 : vector<8x128xf32>
    %18 = arith.mulf %14, %14 : vector<8x128xf32>
    %19 = arith.addf %17, %18 : vector<8x128xf32>
    %20 = math.sqrt %19 : vector<8x128xf32>
    %c0_9 = arith.constant 0 : index
    %21 = memref.load %arg2[%c0_9] : memref<1xf32, #tpu.memory_space<smem>>
    %22 = vector.broadcast %21 : f32 to vector<8x128xf32>
    %23 = arith.subf %20, %22 : vector<8x128xf32>
    %c0_10 = arith.constant 0 : index
    %c0_11 = arith.constant 0 : index
    %24 = vector.load %arg4[%c0_10, %c0_11] : memref<8x128xf32, #tpu.memory_space<vmem>>, vector<8x128xf32>
    tpu.vector_store %arg4[%c0_10, %c0_11], %23 {strides = array<i32>} : memref<8x128xf32, #tpu.memory_space<vmem>>, vector<8x128xf32>,
    return
  }
  func.func @transform_0(%arg0: i32) -> i32 {
    %c0_i32 = arith.constant 0 : i32
    %c0_i32_0 = arith.constant 0 : i32
    return %c0_i32 : i32
  }
  func.func @transform_1(%arg0: i32) -> i32 {
    %c0_i32 = arith.constant 0 : i32
    %c0_i32_0 = arith.constant 0 : i32
    return %c0_i32 : i32
  }
  func.func @transform_2(%arg0: i32) -> (i32, i32, i32) {
    %c0_i32 = arith.constant 0 : i32
    %c0_i32_0 = arith.constant 0 : i32
    %c0_i32_1 = arith.constant 0 : i32
    return %c0_i32, %c0_i32_0, %arg0 : i32, i32, i32
  }
  func.func @transform_3(%arg0: i32) -> (i32, i32) {
    %c0_i32 = arith.constant 0 : i32
    %c0_i32_0 = arith.constant 0 : i32
    return %c0_i32, %arg0 : i32, i32
  }
}

</mosaic_0001>

<llo_original>
// kernel: _sphere_sdf_impl.1
$region0: #{_sphere_sdf_impl.1}
  #allocation0 [shape = 'u32[]', space=smem, size = 0x4, offset = 0x4, fixed_abs, tag = 'smem constant byte address 0x4 - core index']
  #allocation1 [shape = 'u32[72,128]{1,0:T(1,128)}', space=vmem, size = 0x9000, scoped, tag = 'internal scratch']
  #allocation2 [shape = 'f32[1]{0:T(128)S(6)}', space=smem, size = 0x200, scoped, tag = 'scoped memory for _sphere_sdf_impl.1']
  %s0 = inlined_call_operand.vmem [shape: f32[3], index: 0, kind: input, shape index: {}]
  %s1 = inlined_call_operand.<no memory space> [shape: f32[1], index: 1, kind: input, shape index: {}]
  %s2 = inlined_call_operand.vmem [shape: f32[3,8,16], index: 2, kind: input, shape index: {}]
  %s3 = inlined_call_operand.vmem [shape: f32[8,16], index: 3, kind: output, shape index: {}]
  %s4 = sld [smem:[#allocation0]]
  $region26: #{_sphere_sdf_impl.1} parent=0
    _
  %s6 = ssub.s32 1, %s4
  %s7 = scalar_select 0, %s6, %s4
  %8 = sst [smem:[#allocation2]] %s1
  $region1: #{_sphere_sdf_impl.1} parent=0
    #allocation3 [shape = 'u8[512]{0}', space=smem, size = 0x200, scoped, tag = 'input window, operand 0, single buffered']
    #allocation4 [shape = 's32[1]{0}', space=sflag, size = 0x4, scoped, tag = 'scoped memory for _sphere_sdf_impl.1']
    %9 = vsyncpa [#allocation4], 0
    // Predicated region
    $region2: #{_sphere_sdf_impl.1} parent=1 // pred_check
      _
    $region3: #{_sphere_sdf_impl.1} parent=1 // pred_check_branch
      %11 = sbr.rel (0) target = $region5
    $region4: #{_sphere_sdf_impl.1} parent=1 // pred_region
      %13 = vsyncadd [#allocation4], 0
      %s15 = sshll.u32 %s0, 4
      %s16 = int_to_ptr.vmem [resolvable:$true] %s15
      %18 = dma.vmem_to_smem %s16, 16, [#allocation3], [#allocation4]
    $region5: #{_sphere_sdf_impl.1} parent=1 // pred_fallthru
      _
    // Predicated region
    $region6: #{_sphere_sdf_impl.1} parent=1 // pred_check
      _
    $region7: #{_sphere_sdf_impl.1} parent=1 // pred_check_branch
      %20 = sbr.rel (0) target = $region9
    $region8: #{_sphere_sdf_impl.1} parent=1 // pred_region
      _
    $region9: #{_sphere_sdf_impl.1} parent=1 // pred_fallthru
      _
    // Predicated region
    $region10: #{_sphere_sdf_impl.1} parent=1 // pred_check
      _
    $region11: #{_sphere_sdf_impl.1} parent=1 // pred_check_branch
      %22 = sbr.rel (0) target = $region13
    $region12: #{_sphere_sdf_impl.1} parent=1 // pred_region
      _
    $region13: #{_sphere_sdf_impl.1} parent=1 // pred_fallthru
      _
    // Predicated region
    $region14: #{_sphere_sdf_impl.1} parent=1 // pred_check
      _
    $region15: #{_sphere_sdf_impl.1} parent=1 // pred_check_branch
      %24 = sbr.rel (0) target = $region17
    $region16: #{_sphere_sdf_impl.1} parent=1 // pred_region
      %26 = dma.done [#allocation4], 16
    $region17: #{_sphere_sdf_impl.1} parent=1 // pred_fallthru
      _
    %27 = sfence
    %v28 = vld [vmem:[%s2] sm:$0xff]
    %s29 = sld [smem:[#allocation3]]
    %v30 = vstv %s29
    %v31 = vsub.f32 %v28, %v30
    %s32 = scalar_lea.vmem %s2, 8
    %v33 = vld [vmem:[%s32] sm:$0xff]
    %s34 = sld [smem:[#allocation3 + $0x1]]
    %v35 = vstv %s34
    %v36 = vsub.f32 %v33, %v35
    %s37 = scalar_lea.vmem %s2, 16
    %v38 = vld [vmem:[%s37] sm:$0xff]
    %s39 = sld [smem:[#allocation3 + $0x2]]
    %v40 = vstv %s39
    %v41 = vsub.f32 %v38, %v40
    %v42 = vmul.f32 %v31, %v31
    %v43 = vmul.f32 %v36, %v36
    %v44 = vadd.f32 %v42, %v43
    %v45 = vmul.f32 %v41, %v41
    %v46 = vadd.f32 %v44, %v45
    %v47 = vrsqrt.pop %v46
    %v48 = vmul.f32 %v47, %v46
    %v49 = vmul.f32 %v48, %v47
    %v50 = vmul.f32 0.5, %v49
    %v51 = vsub.f32 1.5, %v50
    %v52 = vmul.f32 %v47, %v51
    %v53 = vmul.f32 %v46, %v52
    %vm54 = vcmp.eq.f32.partialorder %v46, inf
    %v55 = vsel %vm54, %v46, %v53
    %vm56 = vcmp.eq.f32.partialorder %v46, 0.0
    %v57 = vand.u32 %v46, 2147483648
    %v58 = vsel %vm56, %v57, %v55
    %s59 = sld [smem:[#allocation2]]
    %v60 = vstv %s59
    %v61 = vsub.f32 %v58, %v60
    %62 = vst [vmem:[%s3] sm:$0xff] %v61
    // Predicated region
    $region18: #{_sphere_sdf_impl.1} parent=1 // pred_check
      _
    $region19: #{_sphere_sdf_impl.1} parent=1 // pred_check_branch
      %64 = sbr.rel (0) target = $region21
    $region20: #{_sphere_sdf_impl.1} parent=1 // pred_region
      _
    $region21: #{_sphere_sdf_impl.1} parent=1 // pred_fallthru
      _
    // Predicated region
    $region22: #{_sphere_sdf_impl.1} parent=1 // pred_check
      _
    $region23: #{_sphere_sdf_impl.1} parent=1 // pred_check_branch
      %66 = sbr.rel (0) target = $region25
    $region24: #{_sphere_sdf_impl.1} parent=1 // pred_region
      _
    $region25: #{_sphere_sdf_impl.1} parent=1 // pred_fallthru
      _
    %67 = vsyncpa [#allocation4], 1

</llo_original>
